<compile_context>
chip_gen: v5e
topology: v5e:2x2
jax: 0.10.0
libtpu: 0.0.40
codegen_flags: <defaults>
</compile_context>

<pallas_src>
import jax
import jax.numpy as jnp
from jax.experimental import pallas as pl
from jax.experimental.pallas import tpu as pltpu


def qnetwork_kernel(x_ref, a_ref, w1x_ref, w1a_ref, b1_ref, w2_ref, b2_ref,
                    w3_ref, b3_ref, out_ref):
    """Fused 3-layer MLP on one batch tile.

    h1 = relu(x @ W1_obs + a @ W1_act + b1)    # bf16 MXU, f32 accumulation
    h2 = relu(h1 @ W2 + b2)                    # bf16 MXU, f32 accumulation
    q  = sum(h2 * w3_row, -1) + b3             # N=1 layer on VPU/XLU, not MXU
    out[0, :] = q                              # lane-dense (1, TB) store
    """
    h1 = jnp.dot(x_ref[...], w1x_ref[...], preferred_element_type=jnp.float32)
    h1 = h1 + jnp.dot(a_ref[...], w1a_ref[...],
                      preferred_element_type=jnp.float32)
    h1 = jnp.maximum(h1 + b1_ref[...], 0.0)                    # (TB, 256) f32

    h2 = jnp.dot(h1.astype(w2_ref.dtype), w2_ref[...],
                 preferred_element_type=jnp.float32)
    h2 = jnp.maximum(h2 + b2_ref[...], 0.0)                    # (TB, 256) f32

    q = jnp.sum(h2 * w3_ref[...], axis=-1) + b3_ref[0, 0]      # (TB,) f32
    out_ref[...] = q.reshape(1, -1).astype(out_ref.dtype)      # (1, TB)


def _round_up(v, m):
    return (v + m - 1) // m * m


def prepare_params(params, obs_dim, *, mxu_dtype=jnp.bfloat16):
    """One-time parameter prep (do at init, NOT per forward call):
      * split W1 into obs/act halves so the kernel never needs cat([x, a]),
      * lay w3 out as a (1, hidden) row for the VPU multiply,
      * cast the MXU-side weights to bf16 (biases / w3 stay f32)."""
    w1, b1, w2, b2, w3, b3 = params
    return {
        "w1x": w1[:obs_dim].astype(mxu_dtype),              # (obs_dim, H)
        "w1a": w1[obs_dim:].astype(mxu_dtype),               # (act_dim, H)
        "b1": b1.reshape(1, -1).astype(jnp.float32),          # (1, H)
        "w2": w2.astype(mxu_dtype),                           # (H, H)
        "b2": b2.reshape(1, -1).astype(jnp.float32),           # (1, H)
        "w3_row": w3.reshape(1, -1).astype(jnp.float32),        # (1, H)
        "b3": b3.reshape(1, 1).astype(jnp.float32),              # (1, 1) SMEM
    }


def qnetwork_forward(x, a, prep, *, tb=1024):
    """x: (B, *obs_shape) f32, a: (B, act_dim) f32 -> (B, 1) f32."""
    B = x.shape[0]
    x_flat = x.reshape(B, -1)                   # torch flatten(1, -1)
    obs_dim = x_flat.shape[1]
    act_dim = a.shape[1]

    w1x, w1a = prep["w1x"], prep["w1a"]
    b1, w2, b2 = prep["b1"], prep["w2"], prep["b2"]
    w3_row, b3 = prep["w3_row"], prep["b3"]
    hidden = w2.shape[1]
    mxu_dtype = w2.dtype

    # Adaptive batch tiling: pad by at most one sublane group per tile, and
    # use >=2 grid steps whenever B >= 16 so the "parallel" axis can shard
    # across both TensorCores on v7x (near-free on 1-TC v5e/v6e).
    n_tiles = pl.cdiv(B, tb)
    if n_tiles == 1 and B >= 16:
        n_tiles = 2
    TB = _round_up(pl.cdiv(B, n_tiles), 8)
    n_tiles = pl.cdiv(B, TB)
    Bp = n_tiles * TB

    if Bp != B:
        x_flat = jnp.pad(x_flat, ((0, Bp - B), (0, 0)))
        a = jnp.pad(a, ((0, Bp - B), (0, 0)))
    # bf16 activations into the kernel -> half the input DMA; matmuls still
    # accumulate in f32 and all elementwise math in the kernel is f32.
    x_flat = x_flat.astype(mxu_dtype)
    a = a.astype(mxu_dtype)

    out = pl.pallas_call(
        qnetwork_kernel,
        out_shape=jax.ShapeDtypeStruct((n_tiles, TB), jnp.float32),
        grid=(n_tiles,),
        in_specs=[
            # Streamed activations: a new batch tile per grid step.
            pl.BlockSpec((TB, obs_dim), lambda i: (i, 0)),
            pl.BlockSpec((TB, act_dim), lambda i: (i, 0)),
            # Weights/biases: constant index_map -> fetched once, VMEM-resident
            # across the whole grid.  (Small enough that default buffering is
            # fine; could be pipeline_mode=pl.Buffered(1) to shave a copy.)
            pl.BlockSpec((obs_dim, hidden), lambda i: (0, 0)),
            pl.BlockSpec((act_dim, hidden), lambda i: (0, 0)),
            pl.BlockSpec((1, hidden), lambda i: (0, 0)),
            pl.BlockSpec((hidden, hidden), lambda i: (0, 0)),
            pl.BlockSpec((1, hidden), lambda i: (0, 0)),
            pl.BlockSpec((1, hidden), lambda i: (0, 0)),
            # Scalar output bias in SMEM (no padded VMEM tile / DMA for it).
            pl.BlockSpec((1, 1), lambda i: (0, 0),
                         memory_space=pltpu.MemorySpace.SMEM),
        ],
        # Lane-dense output: one (1, TB) row per grid step (batch on lanes).
        out_specs=pl.BlockSpec((1, TB), lambda i: (i, 0)),
        compiler_params=pltpu.CompilerParams(
            dimension_semantics=("parallel",)),
    )(x_flat, a, w1x, w1a, b1, w2, b2, w3_row, b3)

    return out.reshape(-1)[:B].reshape(B, 1)


def init_params(key, in_dim, hidden=256):
    """Deterministic init matching nn.Linear shapes (stored transposed:
    (in_features, out_features)).  Biases kept 2D for TPU layout."""
    k1, k2, k3, k4, k5, k6 = jax.random.split(key, 6)

    def unif(k, shape, fan_in):
        bound = 1.0 / jnp.sqrt(fan_in)
        return jax.random.uniform(k, shape, jnp.float32, -bound, bound)

    w1 = unif(k1, (in_dim, hidden), in_dim)
    b1 = unif(k2, (1, hidden), in_dim)
    w2 = unif(k3, (hidden, hidden), hidden)
    b2 = unif(k4, (1, hidden), hidden)
    w3 = unif(k5, (hidden, 1), hidden)
    b3 = unif(k6, (1, 1), hidden)
    return (w1, b1, w2, b2, w3, b3)


def reference_forward(x, a, params):
    """Pure-JAX f32 reference (mirrors the PyTorch module)."""
    w1, b1, w2, b2, w3, b3 = params
    xa = jnp.concatenate([x.reshape(x.shape[0], -1), a], axis=1)
    h1 = jnp.maximum(xa @ w1 + b1, 0.0)
    h2 = jnp.maximum(h1 @ w2 + b2, 0.0)
    return h2 @ w3 + b3


if __name__ == "__main__":
    key = jax.random.PRNGKey(0)
    kx, ka, kp = jax.random.split(key, 3)

    # Small synthetic env: obs space (4, 8, 8) image-like, action space (8,)
    B, C, H, W = 2, 4, 8, 8
    act_dim = 8
    obs_dim = C * H * W
    in_dim = obs_dim + act_dim

    params = init_params(kp, in_dim)
    prep = prepare_params(params, obs_dim)

    x = jax.random.normal(kx, (B, C, H, W), jnp.float32)
    a = jax.random.normal(ka, (B, act_dim), jnp.float32)

    q = jax.block_until_ready(qnetwork_forward(x, a, prep))
    q_ref = reference_forward(x, a, params)
    assert q.shape == (B, 1)
    # bf16 MXU operands (f32 accumulation) -> looser tolerance vs f32 ref.
    assert jnp.allclose(q, q_ref, atol=5e-2, rtol=5e-2), (
        float(jnp.max(jnp.abs(q - q_ref))))

    # Also exercise the multi-tile / padded-batch (megacore) path.
    B2 = 37
    kx2, ka2 = jax.random.split(jax.random.PRNGKey(1))
    x2 = jax.random.normal(kx2, (B2, C, H, W), jnp.float32)
    a2 = jax.random.normal(ka2, (B2, act_dim), jnp.float32)
    q2 = jax.block_until_ready(qnetwork_forward(x2, a2, prep))
    q2_ref = reference_forward(x2, a2, params)
    assert q2.shape == (B2, 1)
    assert jnp.allclose(q2, q2_ref, atol=5e-2, rtol=5e-2), (
        float(jnp.max(jnp.abs(q2 - q2_ref))))

    print("KERNEL_OK")
</pallas_src>

<mosaic_0001>
module attributes {stable_mosaic.version = 11 : i64} {
  func.func @qnetwork_kernel(%arg0: i32, %arg1: memref<8x256xbf16, #tpu.memory_space<vmem>>, %arg2: memref<8x8xbf16, #tpu.memory_space<vmem>>, %arg3: memref<256x256xbf16, #tpu.memory_space<vmem>>, %arg4: memref<8x256xbf16, #tpu.memory_space<vmem>>, %arg5: memref<1x256xf32, #tpu.memory_space<vmem>>, %arg6: memref<256x256xbf16, #tpu.memory_space<vmem>>, %arg7: memref<1x256xf32, #tpu.memory_space<vmem>>, %arg8: memref<1x256xf32, #tpu.memory_space<vmem>>, %arg9: memref<1x1xf32, #tpu.memory_space<smem>>, %arg10: memref<1x8xf32, #tpu.memory_space<vmem>>) attributes {dimension_semantics = [#tpu.dimension_semantics<parallel>], iteration_bounds = array<i64: 1>, scalar_prefetch = 0 : i64, scratch_operands = 0 : i64, tpu.core_type = #tpu.core_type<tc>, window_params = [{transform_indices = @transform_0, window_bounds = array<i64: 8, 256>}, {transform_indices = @transform_1, window_bounds = array<i64: 8, 8>}, {pipeline_mode = #tpu.pipeline_mode<synchronous>, transform_indices = @transform_2, window_bounds = array<i64: 256, 256>}, {pipeline_mode = #tpu.pipeline_mode<synchronous>, transform_indices = @transform_3, window_bounds = array<i64: 8, 256>}, {pipeline_mode = #tpu.pipeline_mode<synchronous>, transform_indices = @transform_4, window_bounds = array<i64: 1, 256>}, {pipeline_mode = #tpu.pipeline_mode<synchronous>, transform_indices = @transform_5, window_bounds = array<i64: 256, 256>}, {pipeline_mode = #tpu.pipeline_mode<synchronous>, transform_indices = @transform_6, window_bounds = array<i64: 1, 256>}, {pipeline_mode = #tpu.pipeline_mode<synchronous>, transform_indices = @transform_7, window_bounds = array<i64: 1, 256>}, {transform_indices = @transform_8, window_bounds = array<i64: 1, 1>}, {transform_indices = @transform_9, window_bounds = array<i64: 1, 8>}]} {
    %c0 = arith.constant 0 : index
    %c0_0 = arith.constant 0 : index
    %0 = vector.load %arg1[%c0, %c0_0] : memref<8x256xbf16, #tpu.memory_space<vmem>>, vector<8x256xbf16>
    %c0_1 = arith.constant 0 : index
    %c0_2 = arith.constant 0 : index
    %1 = vector.load %arg3[%c0_1, %c0_2] : memref<256x256xbf16, #tpu.memory_space<vmem>>, vector<256x256xbf16>
    %cst = arith.constant dense<0.000000e+00> : vector<8x256xf32>
    %2 = tpu.matmul %0, %1, %cst {dimension_numbers = #tpu.dot_dimension_numbers<[1], [0], [0], [1], [0, 0, 1, 1], [], []>} : vector<8x256xbf16>, vector<256x256xbf16>, vector<8x256xf32> -> vector<8x256xf32>
    %c0_3 = arith.constant 0 : index
    %c0_4 = arith.constant 0 : index
    %3 = vector.load %arg2[%c0_3, %c0_4] : memref<8x8xbf16, #tpu.memory_space<vmem>>, vector<8x8xbf16>
    %c0_5 = arith.constant 0 : index
    %c0_6 = arith.constant 0 : index
    %4 = vector.load %arg4[%c0_5, %c0_6] : memref<8x256xbf16, #tpu.memory_space<vmem>>, vector<8x256xbf16>
    %cst_7 = arith.constant dense<0.000000e+00> : vector<8x256xf32>
    %5 = tpu.matmul %3, %4, %cst_7 {dimension_numbers = #tpu.dot_dimension_numbers<[1], [0], [0], [1], [0, 0, 1, 1], [], []>} : vector<8x8xbf16>, vector<8x256xbf16>, vector<8x256xf32> -> vector<8x256xf32>
    %6 = arith.addf %2, %5 : vector<8x256xf32>
    %c0_8 = arith.constant 0 : index
    %c0_9 = arith.constant 0 : index
    %7 = vector.load %arg5[%c0_8, %c0_9] : memref<1x256xf32, #tpu.memory_space<vmem>>, vector<1x256xf32>
    %8 = vector.broadcast %7 : vector<1x256xf32> to vector<8x256xf32>
    %9 = arith.addf %6, %8 : vector<8x256xf32>
    %cst_10 = arith.constant 0.000000e+00 : f32
    %10 = vector.broadcast %cst_10 : f32 to vector<8x256xf32>
    %11 = arith.maximumf %9, %10 : vector<8x256xf32>
    %12 = arith.truncf %11 : vector<8x256xf32> to vector<8x256xbf16>
    %c0_11 = arith.constant 0 : index
    %c0_12 = arith.constant 0 : index
    %13 = vector.load %arg6[%c0_11, %c0_12] : memref<256x256xbf16, #tpu.memory_space<vmem>>, vector<256x256xbf16>
    %cst_13 = arith.constant dense<0.000000e+00> : vector<8x256xf32>
    %14 = tpu.matmul %12, %13, %cst_13 {dimension_numbers = #tpu.dot_dimension_numbers<[1], [0], [0], [1], [0, 0, 1, 1], [], []>} : vector<8x256xbf16>, vector<256x256xbf16>, vector<8x256xf32> -> vector<8x256xf32>
    %c0_14 = arith.constant 0 : index
    %c0_15 = arith.constant 0 : index
    %15 = vector.load %arg7[%c0_14, %c0_15] : memref<1x256xf32, #tpu.memory_space<vmem>>, vector<1x256xf32>
    %16 = vector.broadcast %15 : vector<1x256xf32> to vector<8x256xf32>
    %17 = arith.addf %14, %16 : vector<8x256xf32>
    %cst_16 = arith.constant 0.000000e+00 : f32
    %18 = vector.broadcast %cst_16 : f32 to vector<8x256xf32>
    %19 = arith.maximumf %17, %18 : vector<8x256xf32>
    %c0_17 = arith.constant 0 : index
    %c0_18 = arith.constant 0 : index
    %20 = vector.load %arg8[%c0_17, %c0_18] : memref<1x256xf32, #tpu.memory_space<vmem>>, vector<1x256xf32>
    %21 = vector.broadcast %20 : vector<1x256xf32> to vector<8x256xf32>
    %22 = arith.mulf %19, %21 : vector<8x256xf32>
    %cst_19 = arith.constant dense<0.000000e+00> : vector<8xf32>
    %23 = vector.multi_reduction <add>, %22, %cst_19 [1] : vector<8x256xf32> to vector<8xf32>
    %c0_20 = arith.constant 0 : index
    %c0_21 = arith.constant 0 : index
    %24 = memref.load %arg9[%c0_20, %c0_21] : memref<1x1xf32, #tpu.memory_space<smem>>
    %25 = vector.broadcast %24 : f32 to vector<8xf32>
    %26 = arith.addf %23, %25 : vector<8xf32>
    %27 = vector.shape_cast %26 : vector<8xf32> to vector<1x8xf32>
    %c0_22 = arith.constant 0 : index
    %c0_23 = arith.constant 0 : index
    %28 = vector.load %arg10[%c0_22, %c0_23] : memref<1x8xf32, #tpu.memory_space<vmem>>, vector<1x8xf32>
    tpu.vector_store %arg10[%c0_22, %c0_23], %27 {strides = array<i32>} : memref<1x8xf32, #tpu.memory_space<vmem>>, vector<1x8xf32>,
    return
  }
  func.func @transform_0(%arg0: i32) -> (i32, i32) {
    %c0_i32 = arith.constant 0 : i32
    %c0_i32_0 = arith.constant 0 : i32
    return %arg0, %c0_i32 : i32, i32
  }
  func.func @transform_1(%arg0: i32) -> (i32, i32) {
    %c0_i32 = arith.constant 0 : i32
    %c0_i32_0 = arith.constant 0 : i32
    return %arg0, %c0_i32 : i32, i32
  }
  func.func @transform_2(%arg0: i32) -> (i32, i32) {
    %c0_i32 = arith.constant 0 : i32
    %c0_i32_0 = arith.constant 0 : i32
    %c0_i32_1 = arith.constant 0 : i32
    return %c0_i32, %c0_i32_0 : i32, i32
  }
  func.func @transform_3(%arg0: i32) -> (i32, i32) {
    %c0_i32 = arith.constant 0 : i32
    %c0_i32_0 = arith.constant 0 : i32
    %c0_i32_1 = arith.constant 0 : i32
    return %c0_i32, %c0_i32_0 : i32, i32
  }
  func.func @transform_4(%arg0: i32) -> (i32, i32) {
    %c0_i32 = arith.constant 0 : i32
    %c0_i32_0 = arith.constant 0 : i32
    %c0_i32_1 = arith.constant 0 : i32
    return %c0_i32, %c0_i32_0 : i32, i32
  }
  func.func @transform_5(%arg0: i32) -> (i32, i32) {
    %c0_i32 = arith.constant 0 : i32
    %c0_i32_0 = arith.constant 0 : i32
    %c0_i32_1 = arith.constant 0 : i32
    return %c0_i32, %c0_i32_0 : i32, i32
  }
  func.func @transform_6(%arg0: i32) -> (i32, i32) {
    %c0_i32 = arith.constant 0 : i32
    %c0_i32_0 = arith.constant 0 : i32
    %c0_i32_1 = arith.constant 0 : i32
    return %c0_i32, %c0_i32_0 : i32, i32
  }
  func.func @transform_7(%arg0: i32) -> (i32, i32) {
    %c0_i32 = arith.constant 0 : i32
    %c0_i32_0 = arith.constant 0 : i32
    %c0_i32_1 = arith.constant 0 : i32
    return %c0_i32, %c0_i32_0 : i32, i32
  }
  func.func @transform_8(%arg0: i32) -> (i32, i32) {
    %c0_i32 = arith.constant 0 : i32
    %c0_i32_0 = arith.constant 0 : i32
    %c0_i32_1 = arith.constant 0 : i32
    return %c0_i32, %c0_i32_0 : i32, i32
  }
  func.func @transform_9(%arg0: i32) -> (i32, i32) {
    %c0_i32 = arith.constant 0 : i32
    %c0_i32_0 = arith.constant 0 : i32
    return %arg0, %c0_i32 : i32, i32
  }
}

</mosaic_0001>

<llo_original>
// kernel: tpu_custom_call.1
$region0: #{tpu_custom_call.1}
  #allocation0 [shape = 'u32[]', space=smem, size = 0x4, offset = 0x4, fixed_abs, tag = 'smem constant byte address 0x4 - core index']
  #allocation1 [shape = 'u32[72,128]{1,0:T(1,128)}', space=vmem, size = 0x9000, scoped, tag = 'internal scratch']
  #allocation2 [shape = 'f32[1,1]{1,0:T(1,128)S(6)}', space=smem, size = 0x200, scoped, tag = 'scoped memory for tpu_custom_call.1']
  %s0 = inlined_call_operand.hbm [shape: bf16[8,256], index: 0, kind: input, shape index: {}]
  %s1 = inlined_call_operand.hbm [shape: bf16[8,8], index: 1, kind: input, shape index: {}]
  %s2 = inlined_call_operand.hbm [shape: bf16[256,256], index: 2, kind: input, shape index: {}]
  %s3 = inlined_call_operand.hbm [shape: bf16[8,256], index: 3, kind: input, shape index: {}]
  %s4 = inlined_call_operand.vmem [shape: f32[1,256], index: 4, kind: input, shape index: {}]
  %s5 = inlined_call_operand.hbm [shape: bf16[256,256], index: 5, kind: input, shape index: {}]
  %s6 = inlined_call_operand.vmem [shape: f32[1,256], index: 6, kind: input, shape index: {}]
  %s7 = inlined_call_operand.vmem [shape: f32[1,256], index: 7, kind: input, shape index: {}]
  %s8 = inlined_call_operand.<no memory space> [shape: f32[1,1], index: 8, kind: input, shape index: {}]
  %s9 = inlined_call_operand.hbm [shape: f32[1,8], index: 9, kind: output, shape index: {}]
  %s10 = sld [smem:[#allocation0]]
  $region66: #{tpu_custom_call.1} parent=0
    _
  %s12 = ssub.s32 1, %s10
  %s13 = scalar_select 0, %s12, %s10
  %14 = sst [smem:[#allocation2]] %s8
  $region1: #{tpu_custom_call.1} parent=0
    #allocation3 [shape = 'u8[4096]{0}', space=vmem, size = 0x1000, scoped, tag = 'input window, operand 0, single buffered']
    #allocation4 [shape = 's32[1]{0}', space=sflag, size = 0x4, scoped, tag = 'scoped memory for tpu_custom_call.1']
    #allocation5 [shape = 's32[1]{0}', space=sflag, size = 0x4, scoped, tag = 'scoped memory for tpu_custom_call.1']
    #allocation6 [shape = 'u8[2048]{0}', space=vmem, size = 0x800, scoped, tag = 'input window, operand 1, single buffered']
    #allocation7 [shape = 's32[1]{0}', space=sflag, size = 0x4, scoped, tag = 'scoped memory for tpu_custom_call.1']
    #allocation8 [shape = 'u8[131072]{0}', space=vmem, size = 0x20000, scoped, tag = 'input window, operand 2, single buffered']
    #allocation9 [shape = 'u8[4096]{0}', space=vmem, size = 0x1000, scoped, tag = 'input window, operand 3, single buffered']
    #allocation10 [shape = 's32[1]{0}', space=sflag, size = 0x4, scoped, tag = 'scoped memory for tpu_custom_call.1']
    #allocation11 [shape = 'u8[131072]{0}', space=vmem, size = 0x20000, scoped, tag = 'input window, operand 5, single buffered']
    #allocation12 [shape = 'u8[512]{0}', space=vmem, size = 0x400, scoped, tag = 'output window, operand 0, single buffered']
    %15 = vsyncpa [#allocation4], 0
    %16 = vsyncpa [#allocation7], 0
    %17 = vsyncpa [#allocation10], 0
    %18 = vsyncpa [#allocation5], 0
    // Predicated region
    $region2: #{tpu_custom_call.1} parent=1 // pred_check
      _
    $region3: #{tpu_custom_call.1} parent=1 // pred_check_branch
      %20 = sbr.rel (0) target = $region5
    $region4: #{tpu_custom_call.1} parent=1 // pred_region
      %22 = vsyncadd [#allocation4], 0
      %s24 = sshll.u32 %s0, 4
      %s25 = int_to_ptr.hbm [resolvable:$true] %s24
      %s26 = sshll.u32 [#allocation3], 4
      %s27 = int_to_ptr.vmem [resolvable:$true] %s26
      %29 = dma.hbm_to_vmem [thread:$0]  %s25, 128, %s27, [#allocation4]
    $region5: #{tpu_custom_call.1} parent=1 // pred_fallthru
      _
    // Predicated region
    $region6: #{tpu_custom_call.1} parent=1 // pred_check
      _
    $region7: #{tpu_custom_call.1} parent=1 // pred_check_branch
      %31 = sbr.rel (0) target = $region9
    $region8: #{tpu_custom_call.1} parent=1 // pred_region
      %33 = vsyncadd [#allocation7], 0
      %s35 = sshll.u32 %s1, 4
      %s36 = int_to_ptr.hbm [resolvable:$true] %s35
      %s37 = sshll.u32 [#allocation6], 4
      %s38 = int_to_ptr.vmem [resolvable:$true] %s37
      %40 = dma.hbm_to_vmem [thread:$0]  %s36, 64, %s38, [#allocation7]
    $region9: #{tpu_custom_call.1} parent=1 // pred_fallthru
      _
    // Predicated region
    $region10: #{tpu_custom_call.1} parent=1 // pred_check
      _
    $region11: #{tpu_custom_call.1} parent=1 // pred_check_branch
      %42 = sbr.rel (0) target = $region13
    $region12: #{tpu_custom_call.1} parent=1 // pred_region
      %44 = vsyncadd [#allocation7], 0
      %s45 = sshll.u32 %s2, 4
      %s46 = int_to_ptr.hbm [resolvable:$true] %s45
      %s47 = sshll.u32 [#allocation8], 4
      %s48 = int_to_ptr.vmem [resolvable:$true] %s47
      %53 = dma.hbm_to_vmem [thread:$0]  %s46, 4096, %s48, [#allocation7], 128, 128, 8
    $region13: #{tpu_custom_call.1} parent=1 // pred_fallthru
      _
    // Predicated region
    $region14: #{tpu_custom_call.1} parent=1 // pred_check
      _
    $region15: #{tpu_custom_call.1} parent=1 // pred_check_branch
      %55 = sbr.rel (0) target = $region17
    $region16: #{tpu_custom_call.1} parent=1 // pred_region
      %57 = vsyncadd [#allocation10], 0
      %s59 = sshll.u32 %s3, 4
      %s60 = int_to_ptr.hbm [resolvable:$true] %s59
      %s61 = sshll.u32 [#allocation9], 4
      %s62 = int_to_ptr.vmem [resolvable:$true] %s61
      %64 = dma.hbm_to_vmem [thread:$0]  %s60, 128, %s62, [#allocation10]
    $region17: #{tpu_custom_call.1} parent=1 // pred_fallthru
      _
    // Predicated region
    $region18: #{tpu_custom_call.1} parent=1 // pred_check
      _
    $region19: #{tpu_custom_call.1} parent=1 // pred_check_branch
      %66 = sbr.rel (0) target = $region21
    $region20: #{tpu_custom_call.1} parent=1 // pred_region
      _
    $region21: #{tpu_custom_call.1} parent=1 // pred_fallthru
      _
    // Predicated region
    $region22: #{tpu_custom_call.1} parent=1 // pred_check
      _
    $region23: #{tpu_custom_call.1} parent=1 // pred_check_branch
      %68 = sbr.rel (0) target = $region25
    $region24: #{tpu_custom_call.1} parent=1 // pred_region
      %70 = vsyncadd [#allocation10], 0
      %s71 = sshll.u32 %s5, 4
      %s72 = int_to_ptr.hbm [resolvable:$true] %s71
      %s73 = sshll.u32 [#allocation11], 4
      %s74 = int_to_ptr.vmem [resolvable:$true] %s73
      %79 = dma.hbm_to_vmem [thread:$0]  %s72, 4096, %s74, [#allocation10], 128, 128, 8
    $region25: #{tpu_custom_call.1} parent=1 // pred_fallthru
      _
    // Predicated region
    $region26: #{tpu_custom_call.1} parent=1 // pred_check
      _
    $region27: #{tpu_custom_call.1} parent=1 // pred_check_branch
      %81 = sbr.rel (0) target = $region29
    $region28: #{tpu_custom_call.1} parent=1 // pred_region
      _
    $region29: #{tpu_custom_call.1} parent=1 // pred_fallthru
      _
    // Predicated region
    $region30: #{tpu_custom_call.1} parent=1 // pred_check
      _
    $region31: #{tpu_custom_call.1} parent=1 // pred_check_branch
      %83 = sbr.rel (0) target = $region33
    $region32: #{tpu_custom_call.1} parent=1 // pred_region
      _
    $region33: #{tpu_custom_call.1} parent=1 // pred_fallthru
      _
    // Predicated region
    $region34: #{tpu_custom_call.1} parent=1 // pred_check
      _
    $region35: #{tpu_custom_call.1} parent=1 // pred_check_branch
      %85 = sbr.rel (0) target = $region37
    $region36: #{tpu_custom_call.1} parent=1 // pred_region
      _
    $region37: #{tpu_custom_call.1} parent=1 // pred_fallthru
      _
    // Predicated region
    $region38: #{tpu_custom_call.1} parent=1 // pred_check
      _
    $region39: #{tpu_custom_call.1} parent=1 // pred_check_branch
      %87 = sbr.rel (0) target = $region41
    $region40: #{tpu_custom_call.1} parent=1 // pred_region
      %89 = dma.done [#allocation4], 128
    $region41: #{tpu_custom_call.1} parent=1 // pred_fallthru
      _
    // Predicated region
    $region42: #{tpu_custom_call.1} parent=1 // pred_check
      _
    $region43: #{tpu_custom_call.1} parent=1 // pred_check_branch
      %91 = sbr.rel (0) target = $region45
    $region44: #{tpu_custom_call.1} parent=1 // pred_region
      %93 = dma.done [#allocation7], 64
    $region45: #{tpu_custom_call.1} parent=1 // pred_fallthru
      _
    // Predicated region
    $region46: #{tpu_custom_call.1} parent=1 // pred_check
      _
    $region47: #{tpu_custom_call.1} parent=1 // pred_check_branch
      %95 = sbr.rel (0) target = $region49
    $region48: #{tpu_custom_call.1} parent=1 // pred_region
      %97 = dma.done [#allocation7], 4096
    $region49: #{tpu_custom_call.1} parent=1 // pred_fallthru
      _
    // Predicated region
    $region50: #{tpu_custom_call.1} parent=1 // pred_check
      _
    $region51: #{tpu_custom_call.1} parent=1 // pred_check_branch
      %99 = sbr.rel (0) target = $region53
    $region52: #{tpu_custom_call.1} parent=1 // pred_region
      %101 = dma.done [#allocation10], 128
    $region53: #{tpu_custom_call.1} parent=1 // pred_fallthru
      _
    // Predicated region
    $region54: #{tpu_custom_call.1} parent=1 // pred_check
      _
    $region55: #{tpu_custom_call.1} parent=1 // pred_check_branch
      %103 = sbr.rel (0) target = $region57
    $region56: #{tpu_custom_call.1} parent=1 // pred_region
      %105 = dma.done [#allocation10], 4096
    $region57: #{tpu_custom_call.1} parent=1 // pred_fallthru
      _
    %v107 = vld [vmem:[#allocation3] sm:$0xff]
    %v108 = vld [vmem:[#allocation8] sm:$0xff]
    %v109 = vld [vmem:[#allocation8 + $0x8] sm:$0xff]
    %v110 = vld [vmem:[#allocation8 + $0x10] sm:$0xff]
    %v111 = vld [vmem:[#allocation8 + $0x18] sm:$0xff]
    %v112 = vld [vmem:[#allocation8 + $0x20] sm:$0xff]
    %v113 = vld [vmem:[#allocation8 + $0x28] sm:$0xff]
    %v114 = vld [vmem:[#allocation8 + $0x30] sm:$0xff]
    %v115 = vld [vmem:[#allocation8 + $0x38] sm:$0xff]
    %v116 = vld [vmem:[#allocation8 + $0x40] sm:$0xff]
    %v117 = vld [vmem:[#allocation8 + $0x48] sm:$0xff]
    %v118 = vld [vmem:[#allocation8 + $0x50] sm:$0xff]
    %v119 = vld [vmem:[#allocation8 + $0x58] sm:$0xff]
    %v120 = vld [vmem:[#allocation8 + $0x60] sm:$0xff]
    %v121 = vld [vmem:[#allocation8 + $0x68] sm:$0xff]
    %v122 = vld [vmem:[#allocation8 + $0x70] sm:$0xff]
    %v123 = vld [vmem:[#allocation8 + $0x78] sm:$0xff]
    %v124 = vld [vmem:[#allocation8 + $0x80] sm:$0xff]
    %v125 = vld [vmem:[#allocation8 + $0x88] sm:$0xff]
    %v126 = vld [vmem:[#allocation8 + $0x90] sm:$0xff]
    %v127 = vld [vmem:[#allocation8 + $0x98] sm:$0xff]
    %v128 = vld [vmem:[#allocation8 + $0xa0] sm:$0xff]
    %v129 = vld [vmem:[#allocation8 + $0xa8] sm:$0xff]
    %v130 = vld [vmem:[#allocation8 + $0xb0] sm:$0xff]
    %v131 = vld [vmem:[#allocation8 + $0xb8] sm:$0xff]
    %v132 = vld [vmem:[#allocation8 + $0xc0] sm:$0xff]
    %v133 = vld [vmem:[#allocation8 + $0xc8] sm:$0xff]
    %v134 = vld [vmem:[#allocation8 + $0xd0] sm:$0xff]
    %v135 = vld [vmem:[#allocation8 + $0xd8] sm:$0xff]
    %v136 = vld [vmem:[#allocation8 + $0xe0] sm:$0xff]
    %v137 = vld [vmem:[#allocation8 + $0xe8] sm:$0xff]
    %v138 = vld [vmem:[#allocation8 + $0xf0] sm:$0xff]
    %v139 = vld [vmem:[#allocation8 + $0xf8] sm:$0xff]
    %v140 = vld [vmem:[#allocation6] sm:$0xf]
    %v141 = vld [vmem:[#allocation9] sm:$0xff]
    %v143 = vunpack.c.l.b16 %v141
    %v144 = vunpack.c.h.b16 %v141
    %v145 = vpack.c.b16 %v143, %v143
    %v146 = vpack.c.b16 %v144, %v144
    %vm147 = vcmask 64512
    %v149 = vsel %vm147, %v140, 0
    %vm151 = vcmask 1043456
    %v153 = vsel %vm151, %v145, 0
    %v156 = vsel %vm151, %v146, 0
    %158 = vmatpush.bf16.msra.mxu0 0
    %159 = vmatpush.bf16.msra.mxu0 0
    %160 = vmatpush.bf16.msra.mxu0 0
    %161 = vmatpush.bf16.msra.mxu0 0
    %162 = vmatpush.bf16.msra.mxu0 0
    %163 = vmatpush.bf16.msra.mxu0 0
    %164 = vmatpush.bf16.msra.mxu0 0
    %165 = vmatpush.bf16.msra.mxu0 %v153
    %166 = vmatmul.bf16.gmra.mxu0 %v149
    %v167 = vpop.f32.mrf.mxu0
    %v168 = vadd.f32 0.0, %v167
    %v169 = vpop.f32.mrf.mxu0
    %170 = vdwg.mxu0
    %171 = vmatpush.bf16.msra.mxu0 0
    %172 = vmatpush.bf16.msra.mxu0 0
    %173 = vmatpush.bf16.msra.mxu0 0
    %174 = vmatpush.bf16.msra.mxu0 0
    %175 = vmatpush.bf16.msra.mxu0 0
    %176 = vmatpush.bf16.msra.mxu0 0
    %177 = vmatpush.bf16.msra.mxu0 0
    %178 = vmatpush.bf16.msra.mxu0 %v156
    %179 = vmatmul.bf16.gmra.mxu0 %v149
    %v180 = vpop.f32.mrf.mxu0
    %v181 = vadd.f32 0.0, %v180
    %v182 = vpop.f32.mrf.mxu0
    %183 = vdwg.mxu0
    %v185 = vunpack.c.l.b16 %v107
    %v186 = vunpack.c.h.b16 %v107
    %v187 = vpack.c.b16 %v185, %v185
    %v188 = vpack.c.b16 %v186, %v186
    %v223 = vunpack.c.l.b16 %v108
    %v224 = vunpack.c.h.b16 %v108
    %v225 = vunpack.c.l.b16 %v109
    %v226 = vunpack.c.h.b16 %v109
    %v227 = vunpack.c.l.b16 %v110
    %v228 = vunpack.c.h.b16 %v110
    %v229 = vunpack.c.l.b16 %v111
    %v230 = vunpack.c.h.b16 %v111
    %v231 = vunpack.c.l.b16 %v112
    %v232 = vunpack.c.h.b16 %v112
    %v233 = vunpack.c.l.b16 %v113
    %v234 = vunpack.c.h.b16 %v113
    %v235 = vunpack.c.l.b16 %v114
    %v236 = vunpack.c.h.b16 %v114
    %v237 = vunpack.c.l.b16 %v115
    %v238 = vunpack.c.h.b16 %v115
    %v239 = vunpack.c.l.b16 %v116
    %v240 = vunpack.c.h.b16 %v116
    %v241 = vunpack.c.l.b16 %v117
    %v242 = vunpack.c.h.b16 %v117
    %v243 = vunpack.c.l.b16 %v118
    %v244 = vunpack.c.h.b16 %v118
    %v245 = vunpack.c.l.b16 %v119
    %v246 = vunpack.c.h.b16 %v119
    %v247 = vunpack.c.l.b16 %v120
    %v248 = vunpack.c.h.b16 %v120
    %v249 = vunpack.c.l.b16 %v121
    %v250 = vunpack.c.h.b16 %v121
    %v251 = vunpack.c.l.b16 %v122
    %v252 = vunpack.c.h.b16 %v122
    %v253 = vunpack.c.l.b16 %v123
    %v254 = vunpack.c.h.b16 %v123
    %v255 = vunpack.c.l.b16 %v124
    %v256 = vunpack.c.h.b16 %v124
    %v257 = vunpack.c.l.b16 %v125
    %v258 = vunpack.c.h.b16 %v125
    %v259 = vunpack.c.l.b16 %v126
    %v260 = vunpack.c.h.b16 %v126
    %v261 = vunpack.c.l.b16 %v127
    %v262 = vunpack.c.h.b16 %v127
    %v263 = vunpack.c.l.b16 %v128
    %v264 = vunpack.c.h.b16 %v128
    %v265 = vunpack.c.l.b16 %v129
    %v266 = vunpack.c.h.b16 %v129
    %v267 = vunpack.c.l.b16 %v130
    %v268 = vunpack.c.h.b16 %v130
    %v269 = vunpack.c.l.b16 %v131
    %v270 = vunpack.c.h.b16 %v131
    %v271 = vunpack.c.l.b16 %v132
    %v272 = vunpack.c.h.b16 %v132
    %v273 = vunpack.c.l.b16 %v133
    %v274 = vunpack.c.h.b16 %v133
    %v275 = vunpack.c.l.b16 %v134
    %v276 = vunpack.c.h.b16 %v134
    %v277 = vunpack.c.l.b16 %v135
    %v278 = vunpack.c.h.b16 %v135
    %v279 = vunpack.c.l.b16 %v136
    %v280 = vunpack.c.h.b16 %v136
    %v281 = vunpack.c.l.b16 %v137
    %v282 = vunpack.c.h.b16 %v137
    %v283 = vunpack.c.l.b16 %v138
    %v284 = vunpack.c.h.b16 %v138
    %v285 = vunpack.c.l.b16 %v139
    %v286 = vunpack.c.h.b16 %v139
    %v287 = vpack.c.b16 %v225, %v223
    %v288 = vpack.c.b16 %v226, %v224
    %v289 = vpack.c.b16 %v229, %v227
    %v290 = vpack.c.b16 %v230, %v228
    %v291 = vpack.c.b16 %v233, %v231
    %v292 = vpack.c.b16 %v234, %v232
    %v293 = vpack.c.b16 %v237, %v235
    %v294 = vpack.c.b16 %v238, %v236
    %v295 = vpack.c.b16 %v241, %v239
    %v296 = vpack.c.b16 %v242, %v240
    %v297 = vpack.c.b16 %v245, %v243
    %v298 = vpack.c.b16 %v246, %v244
    %v299 = vpack.c.b16 %v249, %v247
    %v300 = vpack.c.b16 %v250, %v248
    %v301 = vpack.c.b16 %v253, %v251
    %v302 = vpack.c.b16 %v254, %v252
    %v303 = vpack.c.b16 %v257, %v255
    %v304 = vpack.c.b16 %v258, %v256
    %v305 = vpack.c.b16 %v261, %v259
    %v306 = vpack.c.b16 %v262, %v260
    %v307 = vpack.c.b16 %v265, %v263
    %v308 = vpack.c.b16 %v266, %v264
    %v309 = vpack.c.b16 %v269, %v267
    %v310 = vpack.c.b16 %v270, %v268
    %v311 = vpack.c.b16 %v273, %v271
    %v312 = vpack.c.b16 %v274, %v272
    %v313 = vpack.c.b16 %v277, %v275
    %v314 = vpack.c.b16 %v278, %v276
    %v315 = vpack.c.b16 %v281, %v279
    %v316 = vpack.c.b16 %v282, %v280
    %v317 = vpack.c.b16 %v285, %v283
    %v318 = vpack.c.b16 %v286, %v284
    %351 = vmatpush.bf16.msra.mxu0 %v301
    %352 = vmatpush.bf16.msra.mxu0 %v299
    %353 = vmatpush.bf16.msra.mxu0 %v297
    %354 = vmatpush.bf16.msra.mxu0 %v295
    %355 = vmatpush.bf16.msra.mxu0 %v293
    %356 = vmatpush.bf16.msra.mxu0 %v291
    %357 = vmatpush.bf16.msra.mxu0 %v289
    %358 = vmatpush.bf16.msra.mxu0 %v287
    %359 = vmatmul.bf16.gmra.mxu0 %v187
    %v360 = vpop.f32.mrf.mxu0
    %v361 = vadd.f32 %v168, %v360
    %v362 = vpop.f32.mrf.mxu0
    %363 = vdwg.mxu0
    %364 = vmatpush.bf16.msra.mxu0 %v317
    %365 = vmatpush.bf16.msra.mxu0 %v315
    %366 = vmatpush.bf16.msra.mxu0 %v313
    %367 = vmatpush.bf16.msra.mxu0 %v311
    %368 = vmatpush.bf16.msra.mxu0 %v309
    %369 = vmatpush.bf16.msra.mxu0 %v307
    %370 = vmatpush.bf16.msra.mxu0 %v305
    %371 = vmatpush.bf16.msra.mxu0 %v303
    %372 = vmatmul.bf16.gmra.mxu0 %v188
    %v373 = vpop.f32.mrf.mxu0
    %v374 = vadd.f32 %v361, %v373
    %v375 = vpop.f32.mrf.mxu0
    %376 = vdwg.mxu0
    %377 = vmatpush.bf16.msra.mxu0 %v302
    %378 = vmatpush.bf16.msra.mxu0 %v300
    %379 = vmatpush.bf16.msra.mxu0 %v298
    %380 = vmatpush.bf16.msra.mxu0 %v296
    %381 = vmatpush.bf16.msra.mxu0 %v294
    %382 = vmatpush.bf16.msra.mxu0 %v292
    %383 = vmatpush.bf16.msra.mxu0 %v290
    %384 = vmatpush.bf16.msra.mxu0 %v288
    %385 = vmatmul.bf16.gmra.mxu0 %v187
    %v386 = vpop.f32.mrf.mxu0
    %v387 = vadd.f32 %v181, %v386
    %v388 = vpop.f32.mrf.mxu0
    %389 = vdwg.mxu0
    %390 = vmatpush.bf16.msra.mxu0 %v318
    %391 = vmatpush.bf16.msra.mxu0 %v316
    %392 = vmatpush.bf16.msra.mxu0 %v314
    %393 = vmatpush.bf16.msra.mxu0 %v312
    %394 = vmatpush.bf16.msra.mxu0 %v310
    %395 = vmatpush.bf16.msra.mxu0 %v308
    %396 = vmatpush.bf16.msra.mxu0 %v306
    %397 = vmatpush.bf16.msra.mxu0 %v304
    %398 = vmatmul.bf16.gmra.mxu0 %v188
    %v399 = vpop.f32.mrf.mxu0
    %v400 = vadd.f32 %v387, %v399
    %v401 = vpop.f32.mrf.mxu0
    %402 = vdwg.mxu0
    %v403 = vld [vmem:[%s4] sm:$0x3]
    %v405 = vperm.slane %v403, 0
    %v406 = vperm.slane %v403, 1
    %v409 = vadd.f32 %v374, %v405
    %v410 = vadd.f32 %v400, %v406
    %v411 = vmax.f32 %v409, 0.0
    %v412 = vmax.f32 %v410, 0.0
    %v413 = vpack.c.bf16 %v411, %v411
    %v414 = vpack.c.bf16 %v412, %v412
    %v415 = vld [vmem:[#allocation11] sm:$0xff]
    %v416 = vld [vmem:[#allocation11 + $0x8] sm:$0xff]
    %v417 = vld [vmem:[#allocation11 + $0x10] sm:$0xff]
    %v418 = vld [vmem:[#allocation11 + $0x18] sm:$0xff]
    %v419 = vld [vmem:[#allocation11 + $0x20] sm:$0xff]
    %v420 = vld [vmem:[#allocation11 + $0x28] sm:$0xff]
    %v421 = vld [vmem:[#allocation11 + $0x30] sm:$0xff]
    %v422 = vld [vmem:[#allocation11 + $0x38] sm:$0xff]
    %v423 = vld [vmem:[#allocation11 + $0x40] sm:$0xff]
    %v424 = vld [vmem:[#allocation11 + $0x48] sm:$0xff]
    %v425 = vld [vmem:[#allocation11 + $0x50] sm:$0xff]
    %v426 = vld [vmem:[#allocation11 + $0x58] sm:$0xff]
    %v427 = vld [vmem:[#allocation11 + $0x60] sm:$0xff]
    %v428 = vld [vmem:[#allocation11 + $0x68] sm:$0xff]
    %v429 = vld [vmem:[#allocation11 + $0x70] sm:$0xff]
    %v430 = vld [vmem:[#allocation11 + $0x78] sm:$0xff]
    %v431 = vld [vmem:[#allocation11 + $0x80] sm:$0xff]
    %v432 = vld [vmem:[#allocation11 + $0x88] sm:$0xff]
    %v433 = vld [vmem:[#allocation11 + $0x90] sm:$0xff]
    %v434 = vld [vmem:[#allocation11 + $0x98] sm:$0xff]
    %v435 = vld [vmem:[#allocation11 + $0xa0] sm:$0xff]
    %v436 = vld [vmem:[#allocation11 + $0xa8] sm:$0xff]
    %v437 = vld [vmem:[#allocation11 + $0xb0] sm:$0xff]
    %v438 = vld [vmem:[#allocation11 + $0xb8] sm:$0xff]
    %v439 = vld [vmem:[#allocation11 + $0xc0] sm:$0xff]
    %v440 = vld [vmem:[#allocation11 + $0xc8] sm:$0xff]
    %v441 = vld [vmem:[#allocation11 + $0xd0] sm:$0xff]
    %v442 = vld [vmem:[#allocation11 + $0xd8] sm:$0xff]
    %v443 = vld [vmem:[#allocation11 + $0xe0] sm:$0xff]
    %v444 = vld [vmem:[#allocation11 + $0xe8] sm:$0xff]
    %v445 = vld [vmem:[#allocation11 + $0xf0] sm:$0xff]
    %v446 = vld [vmem:[#allocation11 + $0xf8] sm:$0xff]
    %v447 = vld [vmem:[%s6] sm:$0x3]
    %v449 = vperm.slane %v447, 0
    %v450 = vperm.slane %v447, 1
    %v485 = vunpack.c.l.b16 %v415
    %v486 = vunpack.c.h.b16 %v415
    %v487 = vunpack.c.l.b16 %v416
    %v488 = vunpack.c.h.b16 %v416
    %v489 = vunpack.c.l.b16 %v417
    %v490 = vunpack.c.h.b16 %v417
    %v491 = vunpack.c.l.b16 %v418
    %v492 = vunpack.c.h.b16 %v418
    %v493 = vunpack.c.l.b16 %v419
    %v494 = vunpack.c.h.b16 %v419
    %v495 = vunpack.c.l.b16 %v420
    %v496 = vunpack.c.h.b16 %v420
    %v497 = vunpack.c.l.b16 %v421
    %v498 = vunpack.c.h.b16 %v421
    %v499 = vunpack.c.l.b16 %v422
    %v500 = vunpack.c.h.b16 %v422
    %v501 = vunpack.c.l.b16 %v423
    %v502 = vunpack.c.h.b16 %v423
    %v503 = vunpack.c.l.b16 %v424
    %v504 = vunpack.c.h.b16 %v424
    %v505 = vunpack.c.l.b16 %v425
    %v506 = vunpack.c.h.b16 %v425
    %v507 = vunpack.c.l.b16 %v426
    %v508 = vunpack.c.h.b16 %v426
    %v509 = vunpack.c.l.b16 %v427
    %v510 = vunpack.c.h.b16 %v427
    %v511 = vunpack.c.l.b16 %v428
    %v512 = vunpack.c.h.b16 %v428
    %v513 = vunpack.c.l.b16 %v429
    %v514 = vunpack.c.h.b16 %v429
    %v515 = vunpack.c.l.b16 %v430
    %v516 = vunpack.c.h.b16 %v430
    %v517 = vunpack.c.l.b16 %v431
    %v518 = vunpack.c.h.b16 %v431
    %v519 = vunpack.c.l.b16 %v432
    %v520 = vunpack.c.h.b16 %v432
    %v521 = vunpack.c.l.b16 %v433
    %v522 = vunpack.c.h.b16 %v433
    %v523 = vunpack.c.l.b16 %v434
    %v524 = vunpack.c.h.b16 %v434
    %v525 = vunpack.c.l.b16 %v435
    %v526 = vunpack.c.h.b16 %v435
    %v527 = vunpack.c.l.b16 %v436
    %v528 = vunpack.c.h.b16 %v436
    %v529 = vunpack.c.l.b16 %v437
    %v530 = vunpack.c.h.b16 %v437
    %v531 = vunpack.c.l.b16 %v438
    %v532 = vunpack.c.h.b16 %v438
    %v533 = vunpack.c.l.b16 %v439
    %v534 = vunpack.c.h.b16 %v439
    %v535 = vunpack.c.l.b16 %v440
    %v536 = vunpack.c.h.b16 %v440
    %v537 = vunpack.c.l.b16 %v441
    %v538 = vunpack.c.h.b16 %v441
    %v539 = vunpack.c.l.b16 %v442
    %v540 = vunpack.c.h.b16 %v442
    %v541 = vunpack.c.l.b16 %v443
    %v542 = vunpack.c.h.b16 %v443
    %v543 = vunpack.c.l.b16 %v444
    %v544 = vunpack.c.h.b16 %v444
    %v545 = vunpack.c.l.b16 %v445
    %v546 = vunpack.c.h.b16 %v445
    %v547 = vunpack.c.l.b16 %v446
    %v548 = vunpack.c.h.b16 %v446
    %v549 = vpack.c.b16 %v487, %v485
    %v550 = vpack.c.b16 %v488, %v486
    %v551 = vpack.c.b16 %v491, %v489
    %v552 = vpack.c.b16 %v492, %v490
    %v553 = vpack.c.b16 %v495, %v493
    %v554 = vpack.c.b16 %v496, %v494
    %v555 = vpack.c.b16 %v499, %v497
    %v556 = vpack.c.b16 %v500, %v498
    %v557 = vpack.c.b16 %v503, %v501
    %v558 = vpack.c.b16 %v504, %v502
    %v559 = vpack.c.b16 %v507, %v505
    %v560 = vpack.c.b16 %v508, %v506
    %v561 = vpack.c.b16 %v511, %v509
    %v562 = vpack.c.b16 %v512, %v510
    %v563 = vpack.c.b16 %v515, %v513
    %v564 = vpack.c.b16 %v516, %v514
    %v565 = vpack.c.b16 %v519, %v517
    %v566 = vpack.c.b16 %v520, %v518
    %v567 = vpack.c.b16 %v523, %v521
    %v568 = vpack.c.b16 %v524, %v522
    %v569 = vpack.c.b16 %v527, %v525
    %v570 = vpack.c.b16 %v528, %v526
    %v571 = vpack.c.b16 %v531, %v529
    %v572 = vpack.c.b16 %v532, %v530
    %v573 = vpack.c.b16 %v535, %v533
    %v574 = vpack.c.b16 %v536, %v534
    %v575 = vpack.c.b16 %v539, %v537
    %v576 = vpack.c.b16 %v540, %v538
    %v577 = vpack.c.b16 %v543, %v541
    %v578 = vpack.c.b16 %v544, %v542
    %v579 = vpack.c.b16 %v547, %v545
    %v580 = vpack.c.b16 %v548, %v546
    %613 = vmatpush.bf16.msra.mxu0 %v563
    %614 = vmatpush.bf16.msra.mxu0 %v561
    %615 = vmatpush.bf16.msra.mxu0 %v559
    %616 = vmatpush.bf16.msra.mxu0 %v557
    %617 = vmatpush.bf16.msra.mxu0 %v555
    %618 = vmatpush.bf16.msra.mxu0 %v553
    %619 = vmatpush.bf16.msra.mxu0 %v551
    %620 = vmatpush.bf16.msra.mxu0 %v549
    %621 = vmatmul.bf16.gmra.mxu0 %v413
    %v622 = vpop.f32.mrf.mxu0
    %v623 = vadd.f32 %v449, %v622
    %v624 = vpop.f32.mrf.mxu0
    %625 = vdwg.mxu0
    %626 = vmatpush.bf16.msra.mxu0 %v579
    %627 = vmatpush.bf16.msra.mxu0 %v577
    %628 = vmatpush.bf16.msra.mxu0 %v575
    %629 = vmatpush.bf16.msra.mxu0 %v573
    %630 = vmatpush.bf16.msra.mxu0 %v571
    %631 = vmatpush.bf16.msra.mxu0 %v569
    %632 = vmatpush.bf16.msra.mxu0 %v567
    %633 = vmatpush.bf16.msra.mxu0 %v565
    %634 = vmatmul.bf16.gmra.mxu0 %v414
    %v635 = vpop.f32.mrf.mxu0
    %v636 = vadd.f32 %v623, %v635
    %v637 = vpop.f32.mrf.mxu0
    %638 = vdwg.mxu0
    %639 = vmatpush.bf16.msra.mxu0 %v564
    %640 = vmatpush.bf16.msra.mxu0 %v562
    %641 = vmatpush.bf16.msra.mxu0 %v560
    %642 = vmatpush.bf16.msra.mxu0 %v558
    %643 = vmatpush.bf16.msra.mxu0 %v556
    %644 = vmatpush.bf16.msra.mxu0 %v554
    %645 = vmatpush.bf16.msra.mxu0 %v552
    %646 = vmatpush.bf16.msra.mxu0 %v550
    %647 = vmatmul.bf16.gmra.mxu0 %v413
    %v648 = vpop.f32.mrf.mxu0
    %v649 = vadd.f32 %v450, %v648
    %v650 = vpop.f32.mrf.mxu0
    %651 = vdwg.mxu0
    %652 = vmatpush.bf16.msra.mxu0 %v580
    %653 = vmatpush.bf16.msra.mxu0 %v578
    %654 = vmatpush.bf16.msra.mxu0 %v576
    %655 = vmatpush.bf16.msra.mxu0 %v574
    %656 = vmatpush.bf16.msra.mxu0 %v572
    %657 = vmatpush.bf16.msra.mxu0 %v570
    %658 = vmatpush.bf16.msra.mxu0 %v568
    %659 = vmatpush.bf16.msra.mxu0 %v566
    %660 = vmatmul.bf16.gmra.mxu0 %v414
    %v661 = vpop.f32.mrf.mxu0
    %v662 = vadd.f32 %v649, %v661
    %v663 = vpop.f32.mrf.mxu0
    %664 = vdwg.mxu0
    %v665 = vmax.f32 %v636, 0.0
    %v666 = vmax.f32 %v662, 0.0
    %v667 = vld [vmem:[%s7] sm:$0x3]
    %v669 = vperm.slane %v667, 0
    %v670 = vperm.slane %v667, 1
    %v673 = vmul.f32 %v665, %v669
    %v674 = vmul.f32 %v666, %v670
    %v675 = vadd.f32 %v673, %v674
    %676 = vadd.xlane.f32.xlu0 %v675
    %v677 = vpop.xlane.xlu0 %676
    %s678 = sld [smem:[#allocation2]]
    %v679 = vstv %s678
    %v680 = vadd.f32 %v677, %v679
    %v682 = vlaneseq
    %v683 = vand.u32 %v682, 127
    %v684 = vperm.slane %v680, %v683
    %vm686 = vcmask 57344
    %687 = vst.msk [vmem:[#allocation12] sm:$0x1] %vm686, %v684
    // Predicated region
    $region58: #{tpu_custom_call.1} parent=1 // pred_check
      _
    $region59: #{tpu_custom_call.1} parent=1 // pred_check_branch
      %689 = sbr.rel (0) target = $region61
    $region60: #{tpu_custom_call.1} parent=1 // pred_region
      %691 = vsyncadd [#allocation5], 0
      %s693 = sshll.u32 [#allocation12], 4
      %s694 = int_to_ptr.vmem [resolvable:$true] %s693
      %s695 = sshll.u32 %s9, 4
      %s696 = int_to_ptr.hbm [resolvable:$true] %s695
      %698 = dma.vmem_to_hbm [thread:$0]  %s694, 16, %s696, [#allocation5]
    $region61: #{tpu_custom_call.1} parent=1 // pred_fallthru
      _
    // Predicated region
    $region62: #{tpu_custom_call.1} parent=1 // pred_check
      _
    $region63: #{tpu_custom_call.1} parent=1 // pred_check_branch
      %700 = sbr.rel (0) target = $region65
    $region64: #{tpu_custom_call.1} parent=1 // pred_region
      %702 = dma.done [#allocation5], 16
    $region65: #{tpu_custom_call.1} parent=1 // pred_fallthru
      _
    %703 = vsyncpa [#allocation4], 1
    %704 = vsyncpa [#allocation7], 1
    %705 = vsyncpa [#allocation10], 1
    %706 = vsyncpa [#allocation5], 1

</llo_original>
